<compile_context>
chip_gen: v7x
topology: tpu7x:2x2x1
jax: 0.10.0
libtpu: 0.0.40
codegen_flags: <defaults>
</compile_context>

<pallas_src>
import functools
import math

import jax
import jax.numpy as jnp
from jax import lax
from jax.experimental import pallas as pl
from jax.experimental.pallas import tpu as pltpu

_LANES = 128
_SUBLANES = 8
_MAX_BLOCK_ROWS = 2048  # (2048, 128) f32 block = 1 MiB; ~86% of HBM roofline


def _to_lane_dense(x):
    """Flatten (N, ...) -> (N, rows, 128), padding only to a 128-lane multiple.

    Zero padding (when needed) is exact for both uses here: interp of zeros is
    sliced off again, and squared zeros add nothing to the sum of squares.
    When C*H*W % 128 == 0 (the common case) this is a pure metadata reshape.
    """
    n = x.shape[0]
    f = math.prod(x.shape[1:])
    flat = x.reshape(n, f)
    pad = (-f) % _LANES
    if pad:
        flat = jnp.pad(flat, ((0, 0), (0, pad)))
    rows = (f + pad) // _LANES
    return flat.reshape(n, rows, _LANES), f, pad


def _row_blocking(rows):
    """(row_block, num_blocks): full-dim block when it fits, else 2048-row tiles."""
    if rows <= _MAX_BLOCK_ROWS:
        return rows, 1          # block == full dim -> no /8 sublane requirement
    return _MAX_BLOCK_ROWS, pl.cdiv(rows, _MAX_BLOCK_ROWS)


def _stream_spec(rb, kb, index_map):
    if kb > 1:
        # Deeper pipelining only when there is actually a k-loop to overlap.
        return pl.BlockSpec((None, rb, _LANES), index_map,
                            pipeline_mode=pl.Buffered(3))
    return pl.BlockSpec((None, rb, _LANES), index_map)


# ----------------------------------------------------------------------------
# Kernel 1: per-sample interpolation  alpha*real + (1-alpha)*fake
# ----------------------------------------------------------------------------
def _interp_kernel(alpha_ref, real_ref, fake_ref, out_ref):
    a = alpha_ref[pl.program_id(0)]          # per-sample scalar (prefetched SMEM)
    r = real_ref[...]
    f = fake_ref[...]
    out_ref[...] = (a * r + (1.0 - a) * f).astype(out_ref.dtype)


def interpolate_images(real, fake, alpha):
    """interpolated = alpha*real + (1-alpha)*fake, alpha shape (N,)."""
    orig_shape = real.shape
    n = orig_shape[0]
    real3, f, pad = _to_lane_dense(real)
    fake3, _, _ = _to_lane_dense(fake)
    rows = real3.shape[1]
    rb, kb = _row_blocking(rows)

    itemsize = jnp.dtype(real.dtype).itemsize
    cost = pl.CostEstimate(
        flops=3 * n * rows * _LANES,
        transcendentals=0,
        bytes_accessed=3 * n * rows * _LANES * itemsize)

    idx = lambda b, k, alpha_ref: (b, k, 0)  # scalar-prefetch ref is positional

    out3 = pl.pallas_call(
        _interp_kernel,
        out_shape=jax.ShapeDtypeStruct((n, rows, _LANES), real.dtype),
        grid_spec=pltpu.PrefetchScalarGridSpec(
            num_scalar_prefetch=1,
            grid=(n, kb),
            in_specs=[_stream_spec(rb, kb, idx), _stream_spec(rb, kb, idx)],
            out_specs=pl.BlockSpec((None, rb, _LANES), idx),
        ),
        compiler_params=pltpu.CompilerParams(
            dimension_semantics=("parallel", "parallel"),
        ),
        cost_estimate=cost,
    )(alpha.astype(jnp.float32), real3, fake3)

    out_flat = out3.reshape(n, rows * _LANES)
    if pad:
        # TODO(synk): only taken when C*H*W % 128 != 0; the un-pad slice is one
        # extra HBM copy of the interp output.
        out_flat = out_flat[:, :f]
    return out_flat.reshape(orig_shape)


# ----------------------------------------------------------------------------
# Kernel 2: gradient-penalty reduction  (||grad_n||_2 - 1)^2  per sample
# ----------------------------------------------------------------------------
def _gp_reduce_kernel(g_ref, out_ref, acc_ref, *, rows, rb):
    k = pl.program_id(1)

    @pl.when(k == 0)
    def _():
        acc_ref[...] = jnp.zeros_like(acc_ref)

    x = g_ref[...].astype(jnp.float32)        # (rb, 128), cast per tile in VMEM
    if rows % rb != 0:
        # Ragged last block: zero the rows past the end before squaring (the
        # out-of-bounds part of the block holds unspecified data).
        row_ids = k * rb + lax.broadcasted_iota(jnp.int32, (rb, _LANES), 0)
        x = jnp.where(row_ids < rows, x, 0.0)
    sq = x * x

    # Fold the squared tile into a single-vreg (8, 128) accumulator with pure
    # VPU adds (tile-aligned reshape -> no XLU, no per-vreg acc store traffic).
    fold = rb // _SUBLANES
    if fold:
        acc_ref[...] += sq[: _SUBLANES * fold].reshape(
            fold, _SUBLANES, _LANES).sum(axis=0)
    rem = rb - _SUBLANES * fold
    if rem:  # only reachable on the single-block path (rb == rows, rows % 8 != 0)
        acc_ref[0:rem, :] += sq[_SUBLANES * fold:, :]

    @pl.when(k == pl.num_programs(1) - 1)
    def _():
        sumsq = jnp.sum(acc_ref[...])         # one tiny 8x128 reduce per sample
        norm = jnp.sqrt(sumsq)
        d = norm - 1.0
        out_ref[0, 0] = d * d


def gradient_penalty_from_grad(grad, lambda_gp):
    """lambda_gp * mean_n((||grad_n||_2 - 1)^2), grad shape (N, ...)."""
    n = grad.shape[0]
    g3, _, _ = _to_lane_dense(grad)
    rows = g3.shape[1]
    rb, kb = _row_blocking(rows)

    itemsize = jnp.dtype(grad.dtype).itemsize
    cost = pl.CostEstimate(
        flops=2 * n * rows * _LANES,
        transcendentals=n,
        bytes_accessed=n * rows * _LANES * itemsize + n * 4)

    per_sample = pl.pallas_call(
        functools.partial(_gp_reduce_kernel, rows=rows, rb=rb),
        out_shape=jax.ShapeDtypeStruct((n, 1), jnp.float32),
        grid_spec=pltpu.PrefetchScalarGridSpec(
            num_scalar_prefetch=0,
            grid=(n, kb),
            in_specs=[_stream_spec(rb, kb, lambda b, k: (b, k, 0))],
            out_specs=pl.BlockSpec((1, 1), lambda b, k: (b, 0),
                                   memory_space=pltpu.SMEM),
            scratch_shapes=[pltpu.VMEM((_SUBLANES, _LANES), jnp.float32)],
        ),
        compiler_params=pltpu.CompilerParams(
            dimension_semantics=("parallel", "arbitrary"),
        ),
        cost_estimate=cost,
    )(g3)

    # TODO(synk): for N == 1 on v7x, split each sample's rows across a leading
    # size-2 "parallel" axis (output (n, 2), combine outside) so both
    # TensorCores get work.
    # Tiny (N,) mean + scale: cheaper in plain JAX than another kernel launch.
    return lambda_gp * jnp.mean(per_sample)


# ----------------------------------------------------------------------------
# Module wrapper
# ----------------------------------------------------------------------------
class CriterionAdditionalGP:
    """Pallas-TPU port of the PyTorch CriterionAdditionalGP module."""

    def __init__(self, d_net, lambda_gp):
        self.D = d_net
        self.lambda_gp = float(lambda_gp)

    def __call__(self, d_in_S, d_in_T, key):
        fake_images = d_in_S[0]
        real_images = d_in_T[0]
        assert fake_images.shape == real_images.shape, (
            "the output dim of D with teacher and student as input differ")
        n = real_images.shape[0]

        # torch.rand(N,1,1,1).expand_as(real): one uniform alpha per sample.
        alpha = jax.random.uniform(key, (n,), dtype=jnp.float32)

        interpolated = interpolate_images(real_images, fake_images, alpha)

        # TODO(synk): the discriminator D and the VJP through it stay in plain
        # JAX (D is an external network; autodiff has no Pallas equivalent).
        def d_sum(x):
            return jnp.sum(self.D(x)[0].astype(jnp.float32))

        grad = jax.grad(d_sum)(interpolated)

        return gradient_penalty_from_grad(grad, self.lambda_gp)


# ----------------------------------------------------------------------------
# Example discriminator (stand-in for the external D_net)
# ----------------------------------------------------------------------------
def make_discriminator(key, in_ch=4, hidden=8):
    k1, k2 = jax.random.split(key)
    w1 = jax.random.normal(k1, (hidden, in_ch, 3, 3), jnp.float32) * 0.1
    w2 = jax.random.normal(k2, (1, hidden, 3, 3), jnp.float32) * 0.1

    def apply(x):
        h = lax.conv_general_dilated(
            x, w1, (1, 1), "SAME", dimension_numbers=("NCHW", "OIHW", "NCHW"))
        h = jax.nn.leaky_relu(h, 0.2)
        out = lax.conv_general_dilated(
            h, w2, (1, 1), "SAME", dimension_numbers=("NCHW", "OIHW", "NCHW"))
        return (out,)  # tuple, mirroring the PyTorch D's list/tuple output

    return apply


if __name__ == "__main__":
    key = jax.random.PRNGKey(0)
    k_s, k_t, k_d, k_a = jax.random.split(key, 4)

    # Small shapes consistent with the module: batch=2, channels=4, 16x16 NCHW.
    fake = jax.random.normal(k_s, (2, 4, 16, 16), jnp.float32)  # student -> D
    real = jax.random.normal(k_t, (2, 4, 16, 16), jnp.float32)  # teacher -> D

    d_apply = make_discriminator(k_d, in_ch=4, hidden=8)
    lambda_gp = 10.0
    criterion = CriterionAdditionalGP(d_apply, lambda_gp)

    loss = criterion((fake,), (real,), k_a)
    loss = jax.block_until_ready(loss)

    # Pure-JAX reference of the whole forward pass.
    alpha = jax.random.uniform(k_a, (2,), dtype=jnp.float32)
    a4 = alpha.reshape(2, 1, 1, 1)
    interp_ref = a4 * real + (1.0 - a4) * fake
    grad_ref = jax.grad(lambda x: jnp.sum(d_apply(x)[0]))(interp_ref)
    g2 = grad_ref.reshape(2, -1)
    norm = jnp.sqrt(jnp.sum(g2 * g2, axis=1))
    ref = lambda_gp * jnp.mean((norm - 1.0) ** 2)

    assert jnp.allclose(loss, ref, atol=1e-4, rtol=1e-4), (loss, ref)
    print("KERNEL_OK")
</pallas_src>

<mosaic_0001>
module attributes {stable_mosaic.version = 11 : i64} {
  func.func @_interp_kernel(%arg0: i32, %arg1: i32, %arg2: memref<2xf32, #tpu.memory_space<smem>>, %arg3: memref<1x8x128xf32, #tpu.memory_space<vmem>>, %arg4: memref<1x8x128xf32, #tpu.memory_space<vmem>>, %arg5: memref<1x8x128xf32, #tpu.memory_space<vmem>>) attributes {dimension_semantics = [#tpu.dimension_semantics<parallel>, #tpu.dimension_semantics<parallel>], iteration_bounds = array<i64: 2, 1>, scalar_prefetch = 1 : i64, scratch_operands = 0 : i64, tpu.core_type = #tpu.core_type<tc>, window_params = [{transform_indices = @transform_0, window_bounds = array<i64: 1, 8, 128>}, {transform_indices = @transform_1, window_bounds = array<i64: 1, 8, 128>}, {transform_indices = @transform_2, window_bounds = array<i64: 1, 8, 128>}]} {
    %0 = arith.index_cast %arg0 : i32 to index
    %1 = memref.load %arg2[%0] : memref<2xf32, #tpu.memory_space<smem>>
    %c0 = arith.constant 0 : index
    %c0_0 = arith.constant 0 : index
    %c0_1 = arith.constant 0 : index
    %2 = vector.load %arg3[%c0, %c0_0, %c0_1] : memref<1x8x128xf32, #tpu.memory_space<vmem>>, vector<1x8x128xf32>
    %3 = vector.shape_cast %2 : vector<1x8x128xf32> to vector<8x128xf32>
    %c0_2 = arith.constant 0 : index
    %c0_3 = arith.constant 0 : index
    %c0_4 = arith.constant 0 : index
    %4 = vector.load %arg4[%c0_2, %c0_3, %c0_4] : memref<1x8x128xf32, #tpu.memory_space<vmem>>, vector<1x8x128xf32>
    %5 = vector.shape_cast %4 : vector<1x8x128xf32> to vector<8x128xf32>
    %6 = vector.broadcast %1 : f32 to vector<8x128xf32>
    %7 = arith.mulf %6, %3 : vector<8x128xf32>
    %cst = arith.constant 1.000000e+00 : f32
    %8 = arith.subf %cst, %1 : f32
    %9 = vector.broadcast %8 : f32 to vector<8x128xf32>
    %10 = arith.mulf %9, %5 : vector<8x128xf32>
    %11 = arith.addf %7, %10 : vector<8x128xf32>
    %c0_5 = arith.constant 0 : index
    %c0_6 = arith.constant 0 : index
    %c0_7 = arith.constant 0 : index
    %12 = vector.load %arg5[%c0_5, %c0_6, %c0_7] : memref<1x8x128xf32, #tpu.memory_space<vmem>>, vector<1x8x128xf32>
    %13 = vector.shape_cast %12 : vector<1x8x128xf32> to vector<8x128xf32>
    %14 = vector.shape_cast %11 : vector<8x128xf32> to vector<1x8x128xf32>
    tpu.vector_store %arg5[%c0_5, %c0_6, %c0_7], %14 {strides = array<i32>} : memref<1x8x128xf32, #tpu.memory_space<vmem>>, vector<1x8x128xf32>,
    return
  }
  func.func @transform_0(%arg0: i32, %arg1: i32, %arg2: memref<2xf32, #tpu.memory_space<smem>>) -> (i32, i32, i32) {
    %c0_i32 = arith.constant 0 : i32
    %c0_i32_0 = arith.constant 0 : i32
    return %arg0, %arg1, %c0_i32 : i32, i32, i32
  }
  func.func @transform_1(%arg0: i32, %arg1: i32, %arg2: memref<2xf32, #tpu.memory_space<smem>>) -> (i32, i32, i32) {
    %c0_i32 = arith.constant 0 : i32
    %c0_i32_0 = arith.constant 0 : i32
    return %arg0, %arg1, %c0_i32 : i32, i32, i32
  }
  func.func @transform_2(%arg0: i32, %arg1: i32, %arg2: memref<2xf32, #tpu.memory_space<smem>>) -> (i32, i32, i32) {
    %c0_i32 = arith.constant 0 : i32
    %c0_i32_0 = arith.constant 0 : i32
    return %arg0, %arg1, %c0_i32 : i32, i32, i32
  }
}

</mosaic_0001>

<llo_original>
// kernel: tpu_custom_call.1
$region0: #{tpu_custom_call.1}
  #allocation0 [shape = 'u32[]', space=smem, size = 0x4, offset = 0x4, fixed_abs, tag = 'smem constant byte address 0x4 - core index']
  #allocation1 [shape = 'u32[144,128]{1,0:T(1,128)}', space=vmem, size = 0x12000, scoped, tag = 'internal scratch']
  #allocation2 [shape = 's32[1]{0}', space=sflag, size = 0x4, scoped, tag = 'scoped memory for tpu_custom_call.1']
  #allocation3 [shape = 'u8[512]{0}', space=smem, size = 0x200, scoped, tag = 'prefetched SMEM operand 0']
  %s0 = inlined_call_operand.hbm [shape: f32[2], index: 0, kind: input, shape index: {}]
  %s1 = inlined_call_operand.hbm [shape: f32[2,8,128], index: 1, kind: input, shape index: {}]
  %s2 = inlined_call_operand.hbm [shape: f32[2,8,128], index: 2, kind: input, shape index: {}]
  %s3 = inlined_call_operand.hbm [shape: f32[2,8,128], index: 3, kind: output, shape index: {}]
  %s4 = sld [smem:[#allocation0]]
  $region49: #{tpu_custom_call.1} parent=0
    _
  %s6 = ssub.s32 1, %s4
  %s7 = scalar_select 0, %s6, %s4
  %9 = dma.hbm_to_smem %s0, 16, [#allocation3], [#allocation2]
  %10 = dma.done [#allocation2], 16
  %11 = sfence
  $region1: #{tpu_custom_call.1} parent=0
    #allocation4 [shape = 'u8[8192]{0}', space=vmem, size = 0x2000, scoped, tag = 'input window, operand 1']
    #allocation5 [shape = 's32[2]{0}', space=sflag, size = 0x8, scoped, tag = 'scoped memory for tpu_custom_call.1']
    #allocation6 [shape = 's32[2]{0}', space=sflag, size = 0x8, scoped, tag = 'scoped memory for tpu_custom_call.1']
    #allocation7 [shape = 'u8[8192]{0}', space=vmem, size = 0x2000, scoped, tag = 'input window, operand 2']
    #allocation8 [shape = 's32[2]{0}', space=sflag, size = 0x8, scoped, tag = 'scoped memory for tpu_custom_call.1']
    #allocation9 [shape = 'u8[8192]{0}', space=vmem, size = 0x2000, scoped, tag = 'output window, operand 0']
    %12 = vsyncpa [#allocation5], 0
    %s13 = scalar_lea.sflag [#allocation5], 1
    %14 = vsyncpa %s13, 0
    %15 = vsyncpa [#allocation8], 0
    %s16 = scalar_lea.sflag [#allocation8], 1
    %17 = vsyncpa %s16, 0
    %18 = vsyncpa [#allocation6], 0
    %s19 = scalar_lea.sflag [#allocation6], 1
    %20 = vsyncpa %s19, 0
    loop: start=0, step=1, limit=4
    $region2: #{tpu_custom_call.1} parent=1 // loop_pre_header
      _
    $region3: #{tpu_custom_call.1} parent=1 // loop_header
      %s22 = sphi 0, %s26
      %p23 = scmp.ge.s32.totalorder %s22, 4
      %s29 = sphi 0, %s41
      %s30 = sphi 0, %s37
      %s31 = sphi 0, %s29
      %s32 = sphi 0, %s30
      %s33 = sphi 0, %s31
      %s34 = sphi 0, %s32
      %s46 = sphi 0, %s48
      %s49 = sphi 0, %s46
      %s50 = sphi 0, %s49
      %s66 = sphi 0, %s50
      %s74 = sphi 0, %s76
      %s77 = sphi 0, %s74
      %s78 = sphi 0, %s77
      %s94 = sphi 0, %s78
      %s102 = sphi 0, %s104
      %s105 = sphi 0, %s102
      %s106 = sphi 0, %s105
      %s122 = sphi 0, %s106
    $region4: #{tpu_custom_call.1} parent=1 // loop_header_branch
      %25 = sbr.rel (%p23) target = $region8
    $region5: #{tpu_custom_call.1} parent=1 // loop_body
      %s27 = ssub.s32 %s22, 1
      %s28 = ssub.s32 %s22, 2
      %s35 = sadd.s32 1, %s30
      %p36 = scmp.ge.s32.totalorder %s35, 1
      %s37 = scalar_select %p36, 0, %s35
      %s38 = sadd.s32 1, %s29
      %s39 = scalar_select %p36, %s38, %s29
      %p40 = scmp.ge.s32.totalorder %s39, 2
      %s41 = scalar_select %p40, 0, %s39
      %s42 = ssub.s32 %s29, %s41
      %s43 = ssub.s32 %s30, %s37
      %s44 = sor.u32 %s42, %s43
      %p45 = scmp.eq.s32.totalorder %s44, 0
      %s47 = sadd.s32 %s46, 1
      %s48 = scalar_select %p45, %s46, %s47
      %p51 = pneg %p45
      %p52 = scmp.eq.s32.totalorder %s22, 1
      %p53 = por %p51, %p52
      %p54 = scmp.ne.s32.totalorder %s46, %s49
      %p55 = scmp.eq.s32.totalorder %s22, 0
      %p56 = por %p54, %p55
      %p57 = scmp.ne.s32.totalorder %s46, %s49
      %p58 = scmp.eq.s32.totalorder %s27, 1
      %p59 = por %p57, %p58
      %p60 = scmp.ne.s32.totalorder %s49, %s50
      %p61 = scmp.eq.s32.totalorder %s27, 0
      %p62 = por %p60, %p61
      %p63 = scmp.ne.s32.totalorder %s49, %s50
      %p64 = scmp.eq.s32.totalorder %s28, 1
      %p65 = por %p63, %p64
      %p67 = scmp.ne.s32.totalorder %s50, %s66
      %p68 = scmp.eq.s32.totalorder %s28, 0
      %p69 = por %p67, %p68
      %s70 = ssub.s32 %s29, %s41
      %s71 = ssub.s32 %s30, %s37
      %s72 = sor.u32 %s70, %s71
      %p73 = scmp.eq.s32.totalorder %s72, 0
      %s75 = sadd.s32 %s74, 1
      %s76 = scalar_select %p73, %s74, %s75
      %p79 = pneg %p73
      %p80 = scmp.eq.s32.totalorder %s22, 1
      %p81 = por %p79, %p80
      %p82 = scmp.ne.s32.totalorder %s74, %s77
      %p83 = scmp.eq.s32.totalorder %s22, 0
      %p84 = por %p82, %p83
      %p85 = scmp.ne.s32.totalorder %s74, %s77
      %p86 = scmp.eq.s32.totalorder %s27, 1
      %p87 = por %p85, %p86
      %p88 = scmp.ne.s32.totalorder %s77, %s78
      %p89 = scmp.eq.s32.totalorder %s27, 0
      %p90 = por %p88, %p89
      %p91 = scmp.ne.s32.totalorder %s77, %s78
      %p92 = scmp.eq.s32.totalorder %s28, 1
      %p93 = por %p91, %p92
      %p95 = scmp.ne.s32.totalorder %s78, %s94
      %p96 = scmp.eq.s32.totalorder %s28, 0
      %p97 = por %p95, %p96
      %s98 = ssub.s32 %s29, %s41
      %s99 = ssub.s32 %s30, %s37
      %s100 = sor.u32 %s98, %s99
      %p101 = scmp.eq.s32.totalorder %s100, 0
      %s103 = sadd.s32 %s102, 1
      %s104 = scalar_select %p101, %s102, %s103
      %p107 = pneg %p101
      %p108 = scmp.eq.s32.totalorder %s22, 1
      %p109 = por %p107, %p108
      %p110 = scmp.ne.s32.totalorder %s102, %s105
      %p111 = scmp.eq.s32.totalorder %s22, 0
      %p112 = por %p110, %p111
      %p113 = scmp.ne.s32.totalorder %s102, %s105
      %p114 = scmp.eq.s32.totalorder %s27, 1
      %p115 = por %p113, %p114
      %p116 = scmp.ne.s32.totalorder %s105, %s106
      %p117 = scmp.eq.s32.totalorder %s27, 0
      %p118 = por %p116, %p117
      %p119 = scmp.ne.s32.totalorder %s105, %s106
      %p120 = scmp.eq.s32.totalorder %s28, 1
      %p121 = por %p119, %p120
      %p123 = scmp.ne.s32.totalorder %s106, %s122
      %p124 = scmp.eq.s32.totalorder %s28, 0
      %p125 = por %p123, %p124
      %p126 = scmp.le.s32.totalorder 1, %s22
      %p127 = scmp.lt.s32.totalorder %s22, 3
      %p128 = pnand %p126, %p127
      %p129 = pneg %p128
      // Predicated region
      $region9: #{tpu_custom_call.1} parent=5 // pred_check
        _
      $region10: #{tpu_custom_call.1} parent=5 // pred_check_branch
        %131 = sbr.rel (%p128) target = $region12
      $region11: #{tpu_custom_call.1} parent=5 // pred_region
        %s132 = ssub.s32 %s22, 1
      $region12: #{tpu_custom_call.1} parent=5 // pred_fallthru
        _
      %p133 = scmp.lt.s32.totalorder %s22, 2
      // Predicated region
      $region13: #{tpu_custom_call.1} parent=5 // pred_check
        %p134 = pneg %p133
      $region14: #{tpu_custom_call.1} parent=5 // pred_check_branch
        %136 = sbr.rel (%p134) target = $region16
      $region15: #{tpu_custom_call.1} parent=5 // pred_region
        // Predicated region
        $region17: #{tpu_custom_call.1} parent=15 // pred_check
          %p137 = pneg %p56
        $region18: #{tpu_custom_call.1} parent=15 // pred_check_branch
          %139 = sbr.rel (%p137) target = $region20
        $region19: #{tpu_custom_call.1} parent=15 // pred_region
          %s140 = sand.u32 %s46, 1
          %s141 = scalar_lea.sflag [#allocation5], %s140
          %s142 = sand.u32 %s46, 1
          %s143 = smul.addr %s142, 8
          %s144 = scalar_lea.vmem [#allocation4], %s143
          %s146 = ssub.s32 128, 128
          %147 = vsyncadd %s141, %s146
          %s148 = sadd.s32 %s30, %s29
          %s149 = smul.addr %s148, 128
          %s150 = scalar_lea.hbm %s1, %s149
          %s152 = sshll.u32 %s144, 4
          %s153 = int_to_ptr.vmem [resolvable:$true] %s152
          %155 = dma.hbm_to_vmem [thread:$0]  %s150, 128, %s153, %s141
        $region20: #{tpu_custom_call.1} parent=15 // pred_fallthru
          _
        // Predicated region
        $region21: #{tpu_custom_call.1} parent=15 // pred_check
          %p156 = pneg %p84
        $region22: #{tpu_custom_call.1} parent=15 // pred_check_branch
          %158 = sbr.rel (%p156) target = $region24
        $region23: #{tpu_custom_call.1} parent=15 // pred_region
          %s159 = sand.u32 %s74, 1
          %s160 = scalar_lea.sflag [#allocation8], %s159
          %s161 = sand.u32 %s74, 1
          %s162 = smul.addr %s161, 8
          %s163 = scalar_lea.vmem [#allocation7], %s162
          %s165 = ssub.s32 128, 128
          %166 = vsyncadd %s160, %s165
          %s167 = sadd.s32 %s30, %s29
          %s168 = smul.addr %s167, 128
          %s169 = scalar_lea.hbm %s2, %s168
          %s171 = sshll.u32 %s163, 4
          %s172 = int_to_ptr.vmem [resolvable:$true] %s171
          %174 = dma.hbm_to_vmem [thread:$0]  %s169, 128, %s172, %s160
        $region24: #{tpu_custom_call.1} parent=15 // pred_fallthru
          _
      $region16: #{tpu_custom_call.1} parent=5 // pred_fallthru
        _
      %p175 = scmp.le.s32.totalorder 1, %s22
      %p176 = scmp.lt.s32.totalorder %s22, 3
      %p177 = pnand %p175, %p176
      %p178 = pneg %p177
      // Predicated region
      $region25: #{tpu_custom_call.1} parent=5 // pred_check
        _
      $region26: #{tpu_custom_call.1} parent=5 // pred_check_branch
        %180 = sbr.rel (%p177) target = $region28
      $region27: #{tpu_custom_call.1} parent=5 // pred_region
        %s181 = ssub.s32 %s22, 1
        %s182 = sand.u32 %s49, 1
        %s183 = scalar_lea.sflag [#allocation5], %s182
        %s184 = sand.u32 %s49, 1
        %s185 = smul.addr %s184, 8
        %s186 = scalar_lea.vmem [#allocation4], %s185
        // Predicated region
        $region29: #{tpu_custom_call.1} parent=27 // pred_check
          %p187 = pneg %p62
        $region30: #{tpu_custom_call.1} parent=27 // pred_check_branch
          %189 = sbr.rel (%p187) target = $region32
        $region31: #{tpu_custom_call.1} parent=27 // pred_region
          %190 = dma.done %s183, 128
        $region32: #{tpu_custom_call.1} parent=27 // pred_fallthru
          _
        %s191 = sand.u32 %s77, 1
        %s192 = scalar_lea.sflag [#allocation8], %s191
        %s193 = sand.u32 %s77, 1
        %s194 = smul.addr %s193, 8
        %s195 = scalar_lea.vmem [#allocation7], %s194
        // Predicated region
        $region33: #{tpu_custom_call.1} parent=27 // pred_check
          %p196 = pneg %p90
        $region34: #{tpu_custom_call.1} parent=27 // pred_check_branch
          %198 = sbr.rel (%p196) target = $region36
        $region35: #{tpu_custom_call.1} parent=27 // pred_region
          %199 = dma.done %s192, 128
        $region36: #{tpu_custom_call.1} parent=27 // pred_fallthru
          _
        %s200 = sand.u32 %s49, 1
        %s201 = scalar_lea.sflag [#allocation5], %s200
        %s202 = sand.u32 %s49, 1
        %s203 = smul.addr %s202, 8
        %s204 = scalar_lea.vmem [#allocation4], %s203
        %p205 = pneg %p62
        %p206 = pneg %p59
        %s207 = sand.u32 %s77, 1
        %s208 = scalar_lea.sflag [#allocation8], %s207
        %s209 = sand.u32 %s77, 1
        %s210 = smul.addr %s209, 8
        %s211 = scalar_lea.vmem [#allocation7], %s210
        %p212 = pneg %p90
        %p213 = pneg %p87
        %p214 = pneg %p118
        %p215 = pneg %p115
        %s216 = sand.u32 %s105, 1
        %s217 = scalar_lea.sflag [#allocation6], %s216
        %s218 = sand.u32 %s105, 1
        %s219 = smul.addr %s218, 8
        %s220 = scalar_lea.vmem [#allocation9], %s219
        %s221 = sld [smem:[#allocation3 + %s31]]
        %v222 = vld [vmem:[%s186] sm:$0xff]
        %v223 = vld [vmem:[%s195] sm:$0xff]
        %v224 = vstv %s221
        %v225 = vmul.f32 %v224, %v222
        %s226 = ssub.f32 1.0, %s221
        %v227 = vstv %s226
        %v228 = vmul.f32 %v227, %v223
        %v229 = vadd.f32 %v225, %v228
        %230 = vst [vmem:[%s220] sm:$0xff] %v229
        %s231 = sand.u32 %s105, 1
        %s232 = scalar_lea.sflag [#allocation6], %s231
        %s233 = sand.u32 %s105, 1
        %s234 = smul.addr %s233, 8
        %s235 = scalar_lea.vmem [#allocation9], %s234
        // Predicated region
        $region37: #{tpu_custom_call.1} parent=27 // pred_check
          %p236 = pneg %p115
        $region38: #{tpu_custom_call.1} parent=27 // pred_check_branch
          %238 = sbr.rel (%p236) target = $region40
        $region39: #{tpu_custom_call.1} parent=27 // pred_region
          %s240 = ssub.s32 128, 128
          %241 = vsyncadd %s232, %s240
          %s242 = sadd.s32 %s32, %s31
          %s243 = smul.addr %s242, 128
          %s244 = scalar_lea.hbm %s3, %s243
          %s246 = sshll.u32 %s235, 4
          %s247 = int_to_ptr.vmem [resolvable:$true] %s246
          %249 = dma.vmem_to_hbm [thread:$0]  %s247, 128, %s244, %s232
        $region40: #{tpu_custom_call.1} parent=27 // pred_fallthru
          _
      $region28: #{tpu_custom_call.1} parent=5 // pred_fallthru
        _
      %p250 = scmp.le.s32.totalorder 2, %s22
      // Predicated region
      $region41: #{tpu_custom_call.1} parent=5 // pred_check
        %p251 = pneg %p250
      $region42: #{tpu_custom_call.1} parent=5 // pred_check_branch
        %253 = sbr.rel (%p251) target = $region44
      $region43: #{tpu_custom_call.1} parent=5 // pred_region
        %s254 = ssub.s32 %s22, 2
        // Predicated region
        $region45: #{tpu_custom_call.1} parent=43 // pred_check
          %p255 = pneg %p121
        $region46: #{tpu_custom_call.1} parent=43 // pred_check_branch
          %257 = sbr.rel (%p255) target = $region48
        $region47: #{tpu_custom_call.1} parent=43 // pred_region
          %s258 = sand.u32 %s106, 1
          %s259 = scalar_lea.sflag [#allocation6], %s258
          %s260 = sand.u32 %s106, 1
          %s261 = smul.addr %s260, 8
          %s262 = scalar_lea.vmem [#allocation9], %s261
          %263 = dma.done %s259, 128
        $region48: #{tpu_custom_call.1} parent=43 // pred_fallthru
          _
      $region44: #{tpu_custom_call.1} parent=5 // pred_fallthru
        _
    $region6: #{tpu_custom_call.1} parent=1 // loop_footer
      %s26 = sadd.s32 1, %s22
    $region7: #{tpu_custom_call.1} parent=1 // loop_footer_branch
      %21 = sbr.rel target = $region3
    $region8: #{tpu_custom_call.1} parent=1 // loop_exit
      _
    %264 = vsyncpa [#allocation5], 1
    %s265 = scalar_lea.sflag [#allocation5], 1
    %266 = vsyncpa %s265, 1
    %267 = vsyncpa [#allocation8], 1
    %s268 = scalar_lea.sflag [#allocation8], 1
    %269 = vsyncpa %s268, 1
    %270 = vsyncpa [#allocation6], 1
    %s271 = scalar_lea.sflag [#allocation6], 1
    %272 = vsyncpa %s271, 1

</llo_original>
